<compile_context>
chip_gen: v7x
topology: tpu7x:2x2x1
jax: 0.10.0
libtpu: 0.0.40
codegen_flags: <defaults>
</compile_context>

<pallas_src>
import jax
import jax.numpy as jnp
from jax import lax
from jax.experimental import pallas as pl
from jax.experimental.pallas import tpu as pltpu

BN_EPS = 1e-5
LANE = 128


def _round_up(x, m):
    return (x + m - 1) // m * m


def _pick_tile_n(n_pad128):
    # Bigger tiles -> fewer grid steps and wider lane-dense stores, but keep
    # >=2 feature tiles when the width allows it (v7x megacore split).
    if n_pad128 >= 512 and n_pad128 % 256 == 0:
        return 256
    return 128


def _pick_tile_k(in_f):
    # Keep K untiled when it is small; otherwise tile in 512-wide lane-aligned
    # chunks so VMEM residency stays bounded (v7x: 64 MiB physical).
    return in_f if in_f <= 512 else 512


def dense_unit_kernel(x_ref, w_ref, pgb_ref, o_ref, acc_ref):
    # x_ref:   (B, tile_k)       MXU dtype (bf16 or f32)
    # w_ref:   (tile_k, tile_n)  (K, N) layout, lane-dense along N
    # pgb_ref: (3, tile_n) f32   rows = [bias, gamma, beta]
    # o_ref:   (B, tile_n)
    # acc_ref: (B, tile_n) f32   scratch accumulator across the K grid axis
    k = pl.program_id(1)

    @pl.when(k == 0)
    def _():
        acc_ref[...] = jnp.zeros_like(acc_ref)

    # Linear: canonical (B,K) x (K,N) matmul on the MXU, f32 accumulation.
    acc_ref[...] += jnp.dot(x_ref[...], w_ref[...],
                            preferred_element_type=jnp.float32)

    @pl.when(k == pl.num_programs(1) - 1)
    def _():
        pgb = pgb_ref[...]
        bias = pgb[0:1, :]
        gamma = pgb[1:2, :]
        beta = pgb[2:3, :]

        # Bias + ReLU (f32 VPU).
        y = jnp.maximum(acc_ref[...] + bias, 0.0)

        # BatchNorm1d training-mode batch stats in one fused pass:
        # s1 = sum(y), s2 = sum(y*y); var = max(E[y^2] - mean^2, 0).
        inv_b = jnp.float32(1.0 / y.shape[0])
        s1 = jnp.sum(y, axis=0, keepdims=True)
        s2 = jnp.sum(y * y, axis=0, keepdims=True)
        mean = s1 * inv_b
        var = jnp.maximum(s2 * inv_b - mean * mean, 0.0)

        # Fold normalize + affine into one scale/shift (2 VPU ops / element).
        scale = lax.rsqrt(var + BN_EPS) * gamma
        shift = beta - mean * scale

        # Dropout(p=0.0) == identity.
        o_ref[...] = (y * scale + shift).astype(o_ref.dtype)


def prepare_dense_unit_params(w, b, gamma, beta, *, mxu_dtype=jnp.bfloat16):
    """One-time parameter prep (call at init, NOT per forward pass):
    pad out_features to a tile multiple, transpose W to (K, N), cast to the
    MXU dtype, and stack bias/gamma/beta into a single (3, N) f32 array.
    Padded features have zero weight/bias/gamma/beta -> their output is 0 and
    is sliced off in the wrapper."""
    out_f, in_f = w.shape
    n_pad128 = _round_up(out_f, LANE)
    tile_n = _pick_tile_n(n_pad128)
    n_pad = _round_up(out_f, tile_n)
    tile_k = _pick_tile_k(in_f)
    k_pad = _round_up(in_f, tile_k)

    w_kn = jnp.pad(w, ((0, n_pad - out_f), (0, k_pad - in_f))).T.astype(mxu_dtype)
    pgb = jnp.stack([
        jnp.pad(b, (0, n_pad - out_f)),
        jnp.pad(gamma, (0, n_pad - out_f)),
        jnp.pad(beta, (0, n_pad - out_f)),
    ]).astype(jnp.float32)  # (3, n_pad)

    return dict(w_kn=w_kn, pgb=pgb, out_f=out_f, in_f=in_f,
                n_pad=n_pad, k_pad=k_pad, tile_n=tile_n, tile_k=tile_k,
                mxu_dtype=mxu_dtype)


def dense_unit_apply(x, params, *, out_dtype=None):
    """x: (B, in_features).  Returns (B, out_features)."""
    B, in_f = x.shape
    assert in_f == params["in_f"], "in_features mismatch"
    out_dtype = x.dtype if out_dtype is None else out_dtype

    tile_n, tile_k = params["tile_n"], params["tile_k"]
    n_pad, k_pad = params["n_pad"], params["k_pad"]
    mxu_dtype = params["mxu_dtype"]

    x_m = x.astype(mxu_dtype)
    if k_pad != in_f:
        x_m = jnp.pad(x_m, ((0, 0), (0, k_pad - in_f)))

    n_tiles = n_pad // tile_n
    k_steps = k_pad // tile_k

    # Explicit VMEM budget: double-buffered in/out blocks + f32 accumulator.
    mxu_bytes = jnp.dtype(mxu_dtype).itemsize
    out_bytes = jnp.dtype(out_dtype).itemsize
    needed = (2 * (B * tile_k * mxu_bytes            # x block
                   + tile_k * tile_n * mxu_bytes     # W block
                   + 3 * tile_n * 4                  # stacked bias/gamma/beta
                   + B * tile_n * out_bytes)         # output block
              + B * tile_n * 4)                      # accumulator scratch
    vmem_limit = int(min(max(2 * needed + (4 << 20), 16 << 20), 64 << 20))

    out = pl.pallas_call(
        dense_unit_kernel,
        out_shape=jax.ShapeDtypeStruct((B, n_pad), out_dtype),
        grid_spec=pltpu.PrefetchScalarGridSpec(
            num_scalar_prefetch=0,
            grid=(n_tiles, k_steps),                       # K last (reduction)
            in_specs=[
                pl.BlockSpec((B, tile_k), lambda j, k: (0, k)),        # x
                pl.BlockSpec((tile_k, tile_n), lambda j, k: (k, j)),   # W (K,N)
                pl.BlockSpec((3, tile_n), lambda j, k: (0, j)),        # b/g/beta
            ],
            out_specs=pl.BlockSpec((B, tile_n), lambda j, k: (0, j)),
            scratch_shapes=[pltpu.VMEM((B, tile_n), jnp.float32)],
        ),
        compiler_params=pltpu.CompilerParams(
            dimension_semantics=("parallel", "arbitrary"),
            vmem_limit_bytes=vmem_limit,
        ),
    )(x_m, params["w_kn"], params["pgb"])

    return out[:, :params["out_f"]]


def dense_unit(x, w, b, gamma, beta, *, mxu_dtype=jnp.bfloat16, out_dtype=None):
    """Convenience wrapper: prep params + apply.  In a real model, call
    prepare_dense_unit_params once at init and reuse the prepared params."""
    params = prepare_dense_unit_params(w, b, gamma, beta, mxu_dtype=mxu_dtype)
    return dense_unit_apply(x, params, out_dtype=out_dtype)


def dense_unit_ref(x, w, b, gamma, beta, mxu_dtype=None):
    """Pure-JAX reference. If mxu_dtype is given, emulate a bf16-fed MXU."""
    if mxu_dtype is not None:
        y = jnp.dot(x.astype(mxu_dtype), w.astype(mxu_dtype).T,
                    preferred_element_type=jnp.float32)
    else:
        y = x @ w.T
    y = jnp.maximum(y + b, 0.0)
    mean = jnp.mean(y, axis=0, keepdims=True)
    var = jnp.mean((y - mean) ** 2, axis=0, keepdims=True)
    return gamma * (y - mean) / jnp.sqrt(var + BN_EPS) + beta


if __name__ == "__main__":
    B, IN_F, OUT_F = 8, 32, 32

    key = jax.random.PRNGKey(0)
    kx, kw, kb, kg, kbe = jax.random.split(key, 5)

    x = jax.random.normal(kx, (B, IN_F), dtype=jnp.float32)

    # nn.Linear init: U(-1/sqrt(in), 1/sqrt(in)) for weight (out, in) and bias (out,)
    bound = 1.0 / (IN_F ** 0.5)
    w = jax.random.uniform(kw, (OUT_F, IN_F), minval=-bound, maxval=bound, dtype=jnp.float32)
    b = jax.random.uniform(kb, (OUT_F,), minval=-bound, maxval=bound, dtype=jnp.float32)
    gamma = jnp.ones((OUT_F,), jnp.float32) + 0.1 * jax.random.normal(kg, (OUT_F,), jnp.float32)
    beta = 0.1 * jax.random.normal(kbe, (OUT_F,), jnp.float32)

    # 1) f32 MXU path vs strict f32 reference.
    out_f32 = jax.block_until_ready(dense_unit(x, w, b, gamma, beta, mxu_dtype=jnp.float32))
    ref_f32 = dense_unit_ref(x, w, b, gamma, beta)
    assert out_f32.shape == (B, OUT_F)
    assert jnp.allclose(out_f32, ref_f32, atol=1e-3, rtol=1e-3), "f32 path mismatch"

    # 2) default bf16-fed MXU path vs a matched-precision (bf16 matmul, f32 acc) reference.
    out_bf16 = jax.block_until_ready(dense_unit(x, w, b, gamma, beta))
    ref_bf16 = dense_unit_ref(x, w, b, gamma, beta, mxu_dtype=jnp.bfloat16)
    assert out_bf16.shape == (B, OUT_F)
    assert jnp.allclose(out_bf16, ref_bf16, atol=1e-3, rtol=1e-3), "bf16 path mismatch"

    # 3) wider layer exercising the feature grid (200 -> two 128-lane tiles).
    OUT2 = 200
    key2 = jax.random.PRNGKey(1)
    kw2, kb2, kg2, kbe2 = jax.random.split(key2, 4)
    w2 = jax.random.uniform(kw2, (OUT2, IN_F), minval=-bound, maxval=bound, dtype=jnp.float32)
    b2v = jax.random.uniform(kb2, (OUT2,), minval=-bound, maxval=bound, dtype=jnp.float32)
    g2v = jnp.ones((OUT2,), jnp.float32) + 0.1 * jax.random.normal(kg2, (OUT2,), jnp.float32)
    be2v = 0.1 * jax.random.normal(kbe2, (OUT2,), jnp.float32)

    out2 = jax.block_until_ready(dense_unit(x, w2, b2v, g2v, be2v, mxu_dtype=jnp.float32))
    ref2 = dense_unit_ref(x, w2, b2v, g2v, be2v)
    assert out2.shape == (B, OUT2)
    assert jnp.allclose(out2, ref2, atol=1e-3, rtol=1e-3), "gridded path mismatch"

    # 4) larger layer exercising the K reduction axis + 256-wide feature tiles:
    #    in=640 -> tile_k=512, k_pad=1024 (2 K steps); out=512 -> tile_n=256 (2 tiles).
    IN3, OUT3 = 640, 512
    key3 = jax.random.PRNGKey(2)
    kx3, kw3, kb3, kg3, kbe3 = jax.random.split(key3, 5)
    bound3 = 1.0 / (IN3 ** 0.5)
    x3 = jax.random.normal(kx3, (B, IN3), dtype=jnp.float32)
    w3 = jax.random.uniform(kw3, (OUT3, IN3), minval=-bound3, maxval=bound3, dtype=jnp.float32)
    b3 = jax.random.uniform(kb3, (OUT3,), minval=-bound3, maxval=bound3, dtype=jnp.float32)
    g3 = jnp.ones((OUT3,), jnp.float32) + 0.1 * jax.random.normal(kg3, (OUT3,), jnp.float32)
    be3 = 0.1 * jax.random.normal(kbe3, (OUT3,), jnp.float32)

    params3 = prepare_dense_unit_params(w3, b3, g3, be3, mxu_dtype=jnp.bfloat16)
    assert params3["tile_n"] == 256 and params3["k_pad"] // params3["tile_k"] == 2
    out3 = jax.block_until_ready(dense_unit_apply(x3, params3))
    ref3 = dense_unit_ref(x3, w3, b3, g3, be3, mxu_dtype=jnp.bfloat16)
    assert out3.shape == (B, OUT3)
    assert jnp.allclose(out3, ref3, atol=1e-3, rtol=1e-3), "K-tiled path mismatch"

    print("KERNEL_OK")
</pallas_src>

<mosaic_0001>
module attributes {stable_mosaic.version = 11 : i64} {
  func.func @dense_unit_kernel(%arg0: i32, %arg1: i32, %arg2: memref<8x32xf32, #tpu.memory_space<vmem>>, %arg3: memref<32x128xf32, #tpu.memory_space<vmem>>, %arg4: memref<3x128xf32, #tpu.memory_space<vmem>>, %arg5: memref<8x128xf32, #tpu.memory_space<vmem>>, %arg6: memref<8x128xf32, #tpu.memory_space<vmem>>) attributes {dimension_semantics = [#tpu.dimension_semantics<parallel>, #tpu.dimension_semantics<arbitrary>], iteration_bounds = array<i64: 1, 1>, scalar_prefetch = 0 : i64, scratch_operands = 1 : i64, tpu.core_type = #tpu.core_type<tc>, window_params = [{transform_indices = @transform_0, window_bounds = array<i64: 8, 32>}, {transform_indices = @transform_1, window_bounds = array<i64: 32, 128>}, {transform_indices = @transform_2, window_bounds = array<i64: 3, 128>}, {transform_indices = @transform_3, window_bounds = array<i64: 8, 128>}]} {
    %c0_i32 = arith.constant 0 : i32
    %0 = arith.cmpi eq, %arg1, %c0_i32 : i32
    %1 = arith.extui %0 : i1 to i32
    %c0_i32_0 = arith.constant 0 : i32
    %2 = arith.cmpi ne, %1, %c0_i32_0 : i32
    scf.if %2 {
      %cst_10 = arith.constant 0.000000e+00 : f32
      %12 = vector.broadcast %cst_10 : f32 to vector<8x128xf32>
      %c0_11 = arith.constant 0 : index
      %c0_12 = arith.constant 0 : index
      %13 = vector.load %arg6[%c0_11, %c0_12] : memref<8x128xf32, #tpu.memory_space<vmem>>, vector<8x128xf32>
      tpu.vector_store %arg6[%c0_11, %c0_12], %12 {strides = array<i32>} : memref<8x128xf32, #tpu.memory_space<vmem>>, vector<8x128xf32>,
    } else {
    }
    %c0 = arith.constant 0 : index
    %c0_1 = arith.constant 0 : index
    %3 = vector.load %arg6[%c0, %c0_1] : memref<8x128xf32, #tpu.memory_space<vmem>>, vector<8x128xf32>
    %c0_2 = arith.constant 0 : index
    %c0_3 = arith.constant 0 : index
    %4 = vector.load %arg2[%c0_2, %c0_3] : memref<8x32xf32, #tpu.memory_space<vmem>>, vector<8x32xf32>
    %c0_4 = arith.constant 0 : index
    %c0_5 = arith.constant 0 : index
    %5 = vector.load %arg3[%c0_4, %c0_5] : memref<32x128xf32, #tpu.memory_space<vmem>>, vector<32x128xf32>
    %cst = arith.constant dense<0.000000e+00> : vector<8x128xf32>
    %6 = tpu.matmul %4, %5, %cst {dimension_numbers = #tpu.dot_dimension_numbers<[1], [0], [0], [1], [0, 0, 1, 1], [], []>} : vector<8x32xf32>, vector<32x128xf32>, vector<8x128xf32> -> vector<8x128xf32>
    %7 = arith.addf %3, %6 : vector<8x128xf32>
    %c0_6 = arith.constant 0 : index
    %c0_7 = arith.constant 0 : index
    %8 = vector.load %arg6[%c0_6, %c0_7] : memref<8x128xf32, #tpu.memory_space<vmem>>, vector<8x128xf32>
    tpu.vector_store %arg6[%c0_6, %c0_7], %7 {strides = array<i32>} : memref<8x128xf32, #tpu.memory_space<vmem>>, vector<8x128xf32>,
    %c0_i32_8 = arith.constant 0 : i32
    %9 = arith.cmpi eq, %arg1, %c0_i32_8 : i32
    %10 = arith.extui %9 : i1 to i32
    %c0_i32_9 = arith.constant 0 : i32
    %11 = arith.cmpi ne, %10, %c0_i32_9 : i32
    scf.if %11 {
      %c0_10 = arith.constant 0 : index
      %c0_11 = arith.constant 0 : index
      %12 = vector.load %arg4[%c0_10, %c0_11] : memref<3x128xf32, #tpu.memory_space<vmem>>, vector<3x128xf32>
      %13 = vector.extract_strided_slice %12 {offsets = [0, 0], sizes = [1, 128], strides = [1, 1]} : vector<3x128xf32> to vector<1x128xf32>
      %14 = vector.extract_strided_slice %12 {offsets = [1, 0], sizes = [1, 128], strides = [1, 1]} : vector<3x128xf32> to vector<1x128xf32>
      %15 = vector.extract_strided_slice %12 {offsets = [2, 0], sizes = [1, 128], strides = [1, 1]} : vector<3x128xf32> to vector<1x128xf32>
      %c0_12 = arith.constant 0 : index
      %c0_13 = arith.constant 0 : index
      %16 = vector.load %arg6[%c0_12, %c0_13] : memref<8x128xf32, #tpu.memory_space<vmem>>, vector<8x128xf32>
      %17 = vector.broadcast %13 : vector<1x128xf32> to vector<8x128xf32>
      %18 = arith.addf %16, %17 : vector<8x128xf32>
      %cst_14 = arith.constant 0.000000e+00 : f32
      %19 = vector.broadcast %cst_14 : f32 to vector<8x128xf32>
      %20 = arith.maximumf %18, %19 : vector<8x128xf32>
      %cst_15 = arith.constant dense<0.000000e+00> : vector<128xf32>
      %21 = vector.multi_reduction <add>, %20, %cst_15 [0] : vector<8x128xf32> to vector<128xf32>
      %22 = vector.shape_cast %21 : vector<128xf32> to vector<1x128xf32>
      %23 = arith.mulf %20, %20 : vector<8x128xf32>
      %cst_16 = arith.constant dense<0.000000e+00> : vector<128xf32>
      %24 = vector.multi_reduction <add>, %23, %cst_16 [0] : vector<8x128xf32> to vector<128xf32>
      %25 = vector.shape_cast %24 : vector<128xf32> to vector<1x128xf32>
      %cst_17 = arith.constant 1.250000e-01 : f32
      %26 = vector.broadcast %cst_17 : f32 to vector<1x128xf32>
      %27 = arith.mulf %22, %26 : vector<1x128xf32>
      %cst_18 = arith.constant 1.250000e-01 : f32
      %28 = vector.broadcast %cst_18 : f32 to vector<1x128xf32>
      %29 = arith.mulf %25, %28 : vector<1x128xf32>
      %30 = arith.mulf %27, %27 : vector<1x128xf32>
      %31 = arith.subf %29, %30 : vector<1x128xf32>
      %cst_19 = arith.constant 0.000000e+00 : f32
      %32 = vector.broadcast %cst_19 : f32 to vector<1x128xf32>
      %33 = arith.maximumf %31, %32 : vector<1x128xf32>
      %cst_20 = arith.constant 9.99999974E-6 : f32
      %34 = vector.broadcast %cst_20 : f32 to vector<1x128xf32>
      %35 = arith.addf %33, %34 : vector<1x128xf32>
      %36 = math.rsqrt %35 : vector<1x128xf32>
      %37 = arith.mulf %36, %14 : vector<1x128xf32>
      %38 = arith.mulf %27, %37 : vector<1x128xf32>
      %39 = arith.subf %15, %38 : vector<1x128xf32>
      %40 = vector.broadcast %37 : vector<1x128xf32> to vector<8x128xf32>
      %41 = arith.mulf %20, %40 : vector<8x128xf32>
      %42 = vector.broadcast %39 : vector<1x128xf32> to vector<8x128xf32>
      %43 = arith.addf %41, %42 : vector<8x128xf32>
      %c0_21 = arith.constant 0 : index
      %c0_22 = arith.constant 0 : index
      %44 = vector.load %arg5[%c0_21, %c0_22] : memref<8x128xf32, #tpu.memory_space<vmem>>, vector<8x128xf32>
      tpu.vector_store %arg5[%c0_21, %c0_22], %43 {strides = array<i32>} : memref<8x128xf32, #tpu.memory_space<vmem>>, vector<8x128xf32>,
    } else {
    }
    return
  }
  func.func @transform_0(%arg0: i32, %arg1: i32) -> (i32, i32) {
    %c0_i32 = arith.constant 0 : i32
    %c0_i32_0 = arith.constant 0 : i32
    return %c0_i32, %arg1 : i32, i32
  }
  func.func @transform_1(%arg0: i32, %arg1: i32) -> (i32, i32) {
    %c0_i32 = arith.constant 0 : i32
    return %arg1, %arg0 : i32, i32
  }
  func.func @transform_2(%arg0: i32, %arg1: i32) -> (i32, i32) {
    %c0_i32 = arith.constant 0 : i32
    %c0_i32_0 = arith.constant 0 : i32
    return %c0_i32, %arg0 : i32, i32
  }
  func.func @transform_3(%arg0: i32, %arg1: i32) -> (i32, i32) {
    %c0_i32 = arith.constant 0 : i32
    %c0_i32_0 = arith.constant 0 : i32
    return %c0_i32, %arg0 : i32, i32
  }
}

</mosaic_0001>

<llo_original>
// kernel: tpu_custom_call.1
$region0: #{tpu_custom_call.1}
  #allocation0 [shape = 'u32[]', space=smem, size = 0x4, offset = 0x4, fixed_abs, tag = 'smem constant byte address 0x4 - core index']
  #allocation1 [shape = 'u32[144,128]{1,0:T(1,128)}', space=vmem, size = 0x12000, scoped, tag = 'internal scratch']
  #allocation2 [shape = 'f32[8,128]{1,0:T(8,128)}', space=vmem, size = 0x1000, scoped, tag = 'scratch operand']
  %s0 = inlined_call_operand.hbm [shape: f32[8,32], index: 0, kind: input, shape index: {}]
  %s1 = inlined_call_operand.hbm [shape: f32[32,128], index: 1, kind: input, shape index: {}]
  %s2 = inlined_call_operand.vmem [shape: f32[3,128], index: 2, kind: input, shape index: {}]
  %s3 = inlined_call_operand.hbm [shape: f32[8,128], index: 3, kind: output, shape index: {}]
  %s4 = sld [smem:[#allocation0]]
  $region38: #{tpu_custom_call.1} parent=0
    _
  %s6 = ssub.s32 1, %s4
  %s7 = scalar_select 0, %s6, %s4
  $region1: #{tpu_custom_call.1} parent=0
    #allocation3 [shape = 'u8[4096]{0}', space=vmem, size = 0x1000, scoped, tag = 'input window, operand 0, single buffered']
    #allocation4 [shape = 's32[1]{0}', space=sflag, size = 0x4, scoped, tag = 'scoped memory for tpu_custom_call.1']
    #allocation5 [shape = 's32[1]{0}', space=sflag, size = 0x4, scoped, tag = 'scoped memory for tpu_custom_call.1']
    #allocation6 [shape = 'u8[16384]{0}', space=vmem, size = 0x4000, scoped, tag = 'input window, operand 1, single buffered']
    #allocation7 [shape = 's32[1]{0}', space=sflag, size = 0x4, scoped, tag = 'scoped memory for tpu_custom_call.1']
    #allocation8 [shape = 'u8[4096]{0}', space=vmem, size = 0x1000, scoped, tag = 'output window, operand 0, single buffered']
    %8 = vsyncpa [#allocation4], 0
    %9 = vsyncpa [#allocation7], 0
    %10 = vsyncpa [#allocation5], 0
    // Predicated region
    $region2: #{tpu_custom_call.1} parent=1 // pred_check
      _
    $region3: #{tpu_custom_call.1} parent=1 // pred_check_branch
      %12 = sbr.rel (0) target = $region5
    $region4: #{tpu_custom_call.1} parent=1 // pred_region
      %s14 = ssub.s32 128, 128
      %15 = vsyncadd [#allocation4], %s14
      %s17 = sshll.u32 [#allocation3], 4
      %s18 = int_to_ptr.vmem [resolvable:$true] %s17
      %20 = dma.hbm_to_vmem [thread:$0]  %s0, 128, %s18, [#allocation4]
    $region5: #{tpu_custom_call.1} parent=1 // pred_fallthru
      _
    // Predicated region
    $region6: #{tpu_custom_call.1} parent=1 // pred_check
      _
    $region7: #{tpu_custom_call.1} parent=1 // pred_check_branch
      %22 = sbr.rel (0) target = $region9
    $region8: #{tpu_custom_call.1} parent=1 // pred_region
      %s24 = ssub.s32 512, 512
      %25 = vsyncadd [#allocation7], %s24
      %s26 = sshll.u32 [#allocation6], 4
      %s27 = int_to_ptr.vmem [resolvable:$true] %s26
      %32 = dma.hbm_to_vmem [thread:$0]  %s1, 512, %s27, [#allocation7], 128, 128, 8
    $region9: #{tpu_custom_call.1} parent=1 // pred_fallthru
      _
    // Predicated region
    $region10: #{tpu_custom_call.1} parent=1 // pred_check
      _
    $region11: #{tpu_custom_call.1} parent=1 // pred_check_branch
      %34 = sbr.rel (0) target = $region13
    $region12: #{tpu_custom_call.1} parent=1 // pred_region
      _
    $region13: #{tpu_custom_call.1} parent=1 // pred_fallthru
      _
    // Predicated region
    $region14: #{tpu_custom_call.1} parent=1 // pred_check
      _
    $region15: #{tpu_custom_call.1} parent=1 // pred_check_branch
      %36 = sbr.rel (0) target = $region17
    $region16: #{tpu_custom_call.1} parent=1 // pred_region
      %37 = dma.done [#allocation4], 128
    $region17: #{tpu_custom_call.1} parent=1 // pred_fallthru
      _
    // Predicated region
    $region18: #{tpu_custom_call.1} parent=1 // pred_check
      _
    $region19: #{tpu_custom_call.1} parent=1 // pred_check_branch
      %39 = sbr.rel (0) target = $region21
    $region20: #{tpu_custom_call.1} parent=1 // pred_region
      %40 = dma.done [#allocation7], 512
    $region21: #{tpu_custom_call.1} parent=1 // pred_fallthru
      _
    %p41 = scmp.eq.s32.totalorder 0, 0
    // Predicated region
    $region22: #{tpu_custom_call.1} parent=1 // pred_check
      %p42 = pneg %p41
    $region23: #{tpu_custom_call.1} parent=1 // pred_check_branch
      %44 = sbr.rel (%p42) target = $region25
    $region24: #{tpu_custom_call.1} parent=1 // pred_region
      %45 = vst [vmem:[#allocation2] sm:$0xff] 0.0
    $region25: #{tpu_custom_call.1} parent=1 // pred_fallthru
      _
    %v46 = vld [vmem:[#allocation2] sm:$0xff]
    %v47 = vld [vmem:[#allocation3] sm:$0xff]
    %v48 = vld [vmem:[#allocation6] sm:$0xff]
    %v49 = vld [vmem:[#allocation6 + $0x8] sm:$0xff]
    %v50 = vld [vmem:[#allocation6 + $0x10] sm:$0xff]
    %v51 = vld [vmem:[#allocation6 + $0x18] sm:$0xff]
    %vm52 = vcmask 261120
    %v54 = vsel %vm52, %v47, 0
    %56 = vmatprep.subr.mxu0 0.0
    %57 = vmatpush1.msra.mxu0 %v48
    %58 = vmatprep.subr.mxu0 0.0
    %59 = vmatpush1.msra.mxu0 %v49
    %60 = vmatprep.subr.mxu0 0.0
    %61 = vmatpush1.msra.mxu0 %v50
    %62 = vmatprep.subr.mxu0 0.0
    %63 = vmatpush1.msra.mxu0 %v51
    %64 = vmatprep.subr.mxu0 0.0
    %65 = vmatpush1.msra.mxu0 0.0
    %66 = vmatprep.subr.mxu0 0.0
    %67 = vmatpush1.msra.mxu0 0.0
    %68 = vmatprep.subr.mxu0 0.0
    %69 = vmatpush1.msra.mxu0 0.0
    %70 = vmatprep.subr.mxu0 0.0
    %71 = vmatpush1.msra.mxu0 0.0
    %72 = vmatprep.subr.mxu0 0.0
    %73 = vmatpush1.msra.mxu0 0.0
    %74 = vmatprep.subr.mxu0 0.0
    %75 = vmatpush1.msra.mxu0 0.0
    %76 = vmatprep.subr.mxu0 0.0
    %77 = vmatpush1.msra.mxu0 0.0
    %78 = vmatprep.subr.mxu0 0.0
    %79 = vmatpush1.msra.mxu0 0.0
    %80 = vmatprep.subr.mxu0 0.0
    %81 = vmatpush1.msra.mxu0 0.0
    %82 = vmatprep.subr.mxu0 0.0
    %83 = vmatpush1.msra.mxu0 0.0
    %84 = vmatprep.subr.mxu0 0.0
    %85 = vmatpush1.msra.mxu0 0.0
    %86 = vmatprep.subr.mxu0 0.0
    %87 = vmatpush1.msra.mxu0 0.0
    %88 = vmatprep.subr.mxu0 0.0
    %89 = vmatpush1.msra.mxu0 0.0
    %90 = vmatprep.subr.mxu0 0.0
    %91 = vmatpush1.msra.mxu0 0.0
    %92 = vmatprep.subr.mxu0 0.0
    %93 = vmatpush1.msra.mxu0 0.0
    %94 = vmatprep.subr.mxu0 0.0
    %95 = vmatpush1.msra.mxu0 0.0
    %96 = vmatprep.subr.mxu0 0.0
    %97 = vmatpush1.msra.mxu0 0.0
    %98 = vmatprep.subr.mxu0 0.0
    %99 = vmatpush1.msra.mxu0 0.0
    %100 = vmatprep.subr.mxu0 0.0
    %101 = vmatpush1.msra.mxu0 0.0
    %102 = vmatprep.subr.mxu0 0.0
    %103 = vmatpush1.msra.mxu0 0.0
    %104 = vmatprep.subr.mxu0 0.0
    %105 = vmatpush1.msra.mxu0 0.0
    %106 = vmatprep.subr.mxu0 0.0
    %107 = vmatpush1.msra.mxu0 0.0
    %108 = vmatprep.subr.mxu0 0.0
    %109 = vmatpush1.msra.mxu0 0.0
    %110 = vmatprep.subr.mxu0 0.0
    %111 = vmatpush1.msra.mxu0 0.0
    %112 = vmatprep.subr.mxu0 0.0
    %113 = vmatpush1.msra.mxu0 0.0
    %114 = vmatprep.subr.mxu0 0.0
    %115 = vmatpush1.msra.mxu0 0.0
    %116 = vmatprep.subr.mxu0 0.0
    %117 = vmatpush1.msra.mxu0 0.0
    %118 = vmatprep.subr.mxu0 0.0
    %119 = vmatpush1.msra.mxu0 0.0
    %120 = vmatprep.mubr.f32.mxu0 0.0
    %121 = vmatmul.mubr.f32.gmra.mrb[0].mxu0 %v54
    %v122 = vpop.f32.mrb[0].mxu0
    %v123 = vadd.f32 0.0, %v122
    %v124 = vpop.f32.mrb[0].mxu0
    %125 = vdwg.mxu0
    %v126 = vadd.f32 %v46, %v123
    %127 = vst [vmem:[#allocation2] sm:$0xff] %v126
    // Predicated region
    $region26: #{tpu_custom_call.1} parent=1 // pred_check
      %p128 = pneg %p41
    $region27: #{tpu_custom_call.1} parent=1 // pred_check_branch
      %130 = sbr.rel (%p128) target = $region29
    $region28: #{tpu_custom_call.1} parent=1 // pred_region
      %v131 = vld [vmem:[%s2] sm:$0x7]
      %v132 = vld [vmem:[#allocation2] sm:$0xff]
      %v133 = vlaneseq
      %v134 = vshrl.u32 %v133, 7
      %v135 = vsub.s32 0, %v134
      %v136 = vrot.slane %v131, %v135
      %v137 = vadd.f32 %v132, %v136
      %v138 = vmax.f32 %v137, 0.0
      %v139 = vrot.slane %v138, 4
      %v140 = vadd.f32 %v138, %v139
      %v141 = vrot.slane %v140, 2
      %v142 = vadd.f32 %v140, %v141
      %v143 = vrot.slane %v142, 1
      %v144 = vadd.f32 %v142, %v143
      %v145 = vmul.f32 %v138, %v138
      %v146 = vrot.slane %v145, 4
      %v147 = vadd.f32 %v145, %v146
      %v148 = vrot.slane %v147, 2
      %v149 = vadd.f32 %v147, %v148
      %v150 = vrot.slane %v149, 1
      %v151 = vadd.f32 %v149, %v150
      %v152 = vmul.f32 %v144, 0.125
      %v153 = vmul.f32 %v151, 0.125
      %v154 = vmul.f32 %v152, %v152
      %v155 = vsub.f32 %v153, %v154
      %v156 = vmax.f32 %v155, 0.0
      %v157 = vadd.f32 %v156, 1e-05
      %v158 = vrsqrt.pop %v157
      %v159 = vmul.f32 %v158, %v131
      %v160 = vmul.f32 %v152, %v159
      %v162 = vrot.slane %v160, 7
      %v164 = vsub.f32 %v131, %v162
      %v165 = vlaneseq
      %v166 = vshrl.u32 %v165, 7
      %v167 = vsub.s32 1, %v166
      %v168 = vrot.slane %v159, %v167
      %v169 = vmul.f32 %v138, %v168
      %v170 = vlaneseq
      %v171 = vshrl.u32 %v170, 7
      %v172 = vsub.s32 2, %v171
      %v173 = vrot.slane %v164, %v172
      %v174 = vadd.f32 %v169, %v173
      %175 = vst [vmem:[#allocation8] sm:$0xff] %v174
    $region29: #{tpu_custom_call.1} parent=1 // pred_fallthru
      _
    // Predicated region
    $region30: #{tpu_custom_call.1} parent=1 // pred_check
      _
    $region31: #{tpu_custom_call.1} parent=1 // pred_check_branch
      %177 = sbr.rel (0) target = $region33
    $region32: #{tpu_custom_call.1} parent=1 // pred_region
      %s179 = ssub.s32 128, 128
      %180 = vsyncadd [#allocation5], %s179
      %s182 = sshll.u32 [#allocation8], 4
      %s183 = int_to_ptr.vmem [resolvable:$true] %s182
      %185 = dma.vmem_to_hbm [thread:$0]  %s183, 128, %s3, [#allocation5]
    $region33: #{tpu_custom_call.1} parent=1 // pred_fallthru
      _
    // Predicated region
    $region34: #{tpu_custom_call.1} parent=1 // pred_check
      _
    $region35: #{tpu_custom_call.1} parent=1 // pred_check_branch
      %187 = sbr.rel (0) target = $region37
    $region36: #{tpu_custom_call.1} parent=1 // pred_region
      %188 = dma.done [#allocation5], 128
    $region37: #{tpu_custom_call.1} parent=1 // pred_fallthru
      _
    %189 = vsyncpa [#allocation4], 1
    %190 = vsyncpa [#allocation7], 1
    %191 = vsyncpa [#allocation5], 1

</llo_original>
